<compile_context>
chip_gen: v7x
topology: tpu7x:2x2x1
jax: 0.10.0
libtpu: 0.0.40
codegen_flags: <defaults>
</compile_context>

<pallas_src>
import functools

import jax
import jax.numpy as jnp
from jax.experimental import pallas as pl
from jax.experimental.pallas import tpu as pltpu


def _contrastive_loss_kernel(x_ref, y_ref, label_ref, out_ref, *,
                             batch, margin, block_rows, tiles_per_chunk,
                             needs_mask):
    c = pl.program_id(0)                 # parallel chunk axis
    t = pl.program_id(1)                 # sequential tile-within-chunk axis
    g = c * tiles_per_chunk + t          # global (unclamped) row-tile index

    # Per-chunk resident accumulator: this chunk's output block stays in VMEM
    # across the whole inner axis; single HBM writeback per chunk.
    @pl.when(t == 0)
    def _():
        out_ref[...] = jnp.zeros_like(out_ref)

    # Stream in native dtype, compute in f32.
    x = x_ref[...].astype(jnp.float32)   # (TB, N)
    y = y_ref[...].astype(jnp.float32)   # (TB, N)

    # Resident label: slice this tile's rows from the VMEM-resident column.
    start = g * block_rows
    if block_rows % 8 == 0:
        start = pl.multiple_of(start, 8)             # sublane-aligned slice
    lab = label_ref[pl.ds(start, block_rows), :]     # (TB, 1) f32

    diff = x - y
    sq_dist = jnp.sum(diff * diff, axis=1, keepdims=True)    # (TB, 1)
    dist = jnp.sqrt(sq_dist)                                  # EUP, hidden under DMA
    hinge = jnp.maximum(margin - dist, 0.0)
    per_sample = lab * sq_dist + (1.0 - lab) * hinge * hinge  # unscaled

    def _accumulate(vals):
        out_ref[...] += jnp.sum(vals)

    if needs_mask:
        # Only tiles whose row range extends past the batch pay for the
        # iota/compare/select; steady-state tiles take the cheap branch.
        first_masked = batch // block_rows

        @pl.when(g >= first_masked)
        def _():
            row = (jax.lax.broadcasted_iota(jnp.int32, per_sample.shape, 0)
                   + g * block_rows)
            # Keep this a select: padded/duplicated rows may hold garbage/NaN.
            _accumulate(jnp.where(row < batch, per_sample, 0.0))

        @pl.when(g < first_masked)
        def _():
            _accumulate(per_sample)
    else:
        _accumulate(per_sample)


def _tpu_budget():
    """Generation-aware (target x/y tile bytes, vmem_limit_bytes)."""
    vmem_phys = 128 * 1024 * 1024
    try:
        vmem_phys = int(pltpu.get_tpu_info().vmem_capacity_bytes)
    except Exception:
        pass
    if vmem_phys <= 64 * 1024 * 1024:
        # v7x-class (64 MiB physical VMEM): ~5 MiB tiles, leave headroom.
        return 5 * 1024 * 1024, 44 * 1024 * 1024
    # v5e / v6e (128 MiB physical VMEM): larger streaming tiles.
    return 6 * 1024 * 1024, 56 * 1024 * 1024


def _choose_block_rows(B, N, itemsize, target_bytes):
    """Largest sublane-multiple batch tile with x/y tile ~= target_bytes."""
    tb = target_bytes // max(1, N * itemsize)
    tb = max(8, (int(tb) // 8) * 8)
    return B if tb >= B else tb


def contrastive_loss(x, y, label, margin=1.0, block_rows=None, num_chunks=2):
    """x, y: (B, N) f32/bf16; label: (B,) or (B, 1) in {0, 1}. Returns f32 scalar."""
    assert x.shape == y.shape, f"{x.shape} does not match input 2: {y.shape}"
    B, N = x.shape
    itemsize = jnp.dtype(x.dtype).itemsize

    target_bytes, vmem_limit = _tpu_budget()
    if block_rows is None:
        tb = _choose_block_rows(B, N, itemsize, target_bytes)
    else:
        tb = B if block_rows >= B else max(8, (int(block_rows) // 8) * 8)

    # Guard against embeddings too wide to double-buffer even at tb=8.
    # TODO(synk): for such N, add an inner "arbitrary" grid axis over N that
    # accumulates per-row sq_dist in a (tb, 1) scratch and defers the
    # sqrt/hinge/label math to the last N-step.
    tile_bytes = tb * N * itemsize
    if 4 * tile_bytes + (1 << 20) > vmem_limit:
        raise ValueError(
            f"Embedding width N={N} too large for a ({tb}, {N}) tile to be "
            f"double-buffered within the {vmem_limit >> 20} MiB VMEM budget.")

    num_tiles = pl.cdiv(B, tb)
    n_chunks = max(1, min(int(num_chunks), num_tiles))
    tiles_per_chunk = pl.cdiv(num_tiles, n_chunks)
    pad_rows = n_chunks * tiles_per_chunk * tb      # grid row coverage
    needs_mask = pad_rows != B
    last_tile = num_tiles - 1

    # Resident label, zero-padded to the grid's full row coverage so in-kernel
    # slices (including redundant tiles) are always in bounds.
    label2d = jnp.reshape(label, (B, 1)).astype(jnp.float32)
    if pad_rows > B:
        label2d = jnp.pad(label2d, ((0, pad_rows - B), (0, 0)))

    if n_chunks * tiles_per_chunk == num_tiles:
        # Exact tile coverage: no redundant grid steps, no clamp needed.
        xy_map = lambda c, t: (c * tiles_per_chunk + t, 0)
    else:
        # Redundant grid steps re-read the last valid tile (stays in bounds);
        # their rows are masked out in-kernel.
        xy_map = lambda c, t: (jnp.minimum(c * tiles_per_chunk + t, last_tile), 0)

    kernel = functools.partial(
        _contrastive_loss_kernel, batch=B, margin=float(margin),
        block_rows=tb, tiles_per_chunk=tiles_per_chunk, needs_mask=needs_mask)

    cost = pl.CostEstimate(
        flops=4 * B * N,
        transcendentals=B,                                    # one sqrt per row
        bytes_accessed=2 * B * N * itemsize + pad_rows * 4 + n_chunks * 4,
    )

    partials = pl.pallas_call(
        kernel,
        out_shape=jax.ShapeDtypeStruct((n_chunks, 1, 1), jnp.float32),
        grid=(n_chunks, tiles_per_chunk),
        in_specs=[
            pl.BlockSpec((tb, N), xy_map),                      # x tile
            pl.BlockSpec((tb, N), xy_map),                      # y tile
            pl.BlockSpec((pad_rows, 1), lambda c, t: (0, 0)),   # resident label
        ],
        out_specs=pl.BlockSpec((1, 1, 1), lambda c, t: (c, 0, 0)),
        compiler_params=pltpu.CompilerParams(
            dimension_semantics=("parallel", "arbitrary"),
            vmem_limit_bytes=vmem_limit,
        ),
        cost_estimate=cost,
    )(x, y, label2d)

    # Fold 0.5 and 1/B into a single scale; tiny XLA epilogue.
    return jnp.sum(partials) * (0.5 / B)


def _reference(x, y, label, margin=1.0):
    xf = x.astype(jnp.float32)
    yf = y.astype(jnp.float32)
    lf = jnp.reshape(label, (-1,)).astype(jnp.float32)
    sq = jnp.sum((xf - yf) ** 2, axis=1)
    d = jnp.sqrt(sq)
    return jnp.mean(0.5 * (lf * sq + (1.0 - lf) * jnp.maximum(margin - d, 0.0) ** 2))


if __name__ == "__main__":
    key = jax.random.PRNGKey(0)

    # --- Test 1: small f32 case, single full block, single chunk ---
    k1, k2, k3, key = jax.random.split(key, 4)
    B, N = 8, 32
    x = jax.random.normal(k1, (B, N), dtype=jnp.float32)
    y = jax.random.normal(k2, (B, N), dtype=jnp.float32)
    label = (jax.random.uniform(k3, (B,)) > 0.5).astype(jnp.float32)
    loss = contrastive_loss(x, y, label)
    jax.block_until_ready(loss)
    ref = _reference(x, y, label)
    assert jnp.allclose(loss, ref, rtol=1e-5, atol=1e-5), (loss, ref)

    # --- Test 2: bf16, 2 chunks x 3 tiles, partial last tile + redundant tile ---
    k1, k2, k3, key = jax.random.split(key, 4)
    B2, N2 = 300, 256
    x2 = jax.random.normal(k1, (B2, N2), dtype=jnp.float32).astype(jnp.bfloat16)
    y2 = jax.random.normal(k2, (B2, N2), dtype=jnp.float32).astype(jnp.bfloat16)
    label2 = (jax.random.uniform(k3, (B2,)) > 0.5).astype(jnp.float32)
    loss2 = contrastive_loss(x2, y2, label2, block_rows=64)
    jax.block_until_ready(loss2)
    ref2 = _reference(x2, y2, label2)
    assert jnp.allclose(loss2, ref2, rtol=1e-4, atol=1e-4), (loss2, ref2)

    # --- Test 3: exact coverage (no remainder mask), 2 chunks x 2 tiles ---
    k1, k2, k3 = jax.random.split(key, 3)
    B3, N3 = 256, 128
    x3 = jax.random.normal(k1, (B3, N3), dtype=jnp.float32)
    y3 = jax.random.normal(k2, (B3, N3), dtype=jnp.float32)
    label3 = (jax.random.uniform(k3, (B3,)) > 0.5).astype(jnp.float32)
    loss3 = contrastive_loss(x3, y3, label3, block_rows=64)
    jax.block_until_ready(loss3)
    ref3 = _reference(x3, y3, label3)
    assert jnp.allclose(loss3, ref3, rtol=1e-5, atol=1e-5), (loss3, ref3)

    print("KERNEL_OK")
</pallas_src>

<mosaic_0001>
module attributes {stable_mosaic.version = 11 : i64} {
  func.func @_contrastive_loss_kernel(%arg0: i32, %arg1: i32, %arg2: memref<8x32xf32, #tpu.memory_space<vmem>>, %arg3: memref<8x32xf32, #tpu.memory_space<vmem>>, %arg4: memref<8x1xf32, #tpu.memory_space<vmem>>, %arg5: memref<1x1x1xf32, #tpu.memory_space<vmem>>) attributes {dimension_semantics = [#tpu.dimension_semantics<parallel>, #tpu.dimension_semantics<arbitrary>], iteration_bounds = array<i64: 1, 1>, scalar_prefetch = 0 : i64, scratch_operands = 0 : i64, tpu.core_type = #tpu.core_type<tc>, window_params = [{transform_indices = @transform_0, window_bounds = array<i64: 8, 32>}, {transform_indices = @transform_1, window_bounds = array<i64: 8, 32>}, {pipeline_mode = #tpu.pipeline_mode<synchronous>, transform_indices = @transform_2, window_bounds = array<i64: 8, 1>}, {transform_indices = @transform_3, window_bounds = array<i64: 1, 1, 1>}]} {
    %c1_i32 = arith.constant 1 : i32
    %0 = arith.muli %arg0, %c1_i32 : i32
    %1 = arith.addi %0, %arg1 : i32
    %c0_i32 = arith.constant 0 : i32
    %2 = arith.cmpi eq, %arg1, %c0_i32 : i32
    %3 = arith.extui %2 : i1 to i32
    %c0_i32_0 = arith.constant 0 : i32
    %4 = arith.cmpi ne, %3, %c0_i32_0 : i32
    scf.if %4 {
      %cst_15 = arith.constant 0.000000e+00 : f32
      %34 = vector.broadcast %cst_15 : f32 to vector<1x1x1xf32>
      %c0_16 = arith.constant 0 : index
      %c0_17 = arith.constant 0 : index
      %c0_18 = arith.constant 0 : index
      %35 = vector.load %arg5[%c0_16, %c0_17, %c0_18] : memref<1x1x1xf32, #tpu.memory_space<vmem>>, vector<1x1x1xf32>
      tpu.vector_store %arg5[%c0_16, %c0_17, %c0_18], %34 {strides = array<i32>} : memref<1x1x1xf32, #tpu.memory_space<vmem>>, vector<1x1x1xf32>,
    } else {
    }
    %c0 = arith.constant 0 : index
    %c0_1 = arith.constant 0 : index
    %5 = vector.load %arg2[%c0, %c0_1] : memref<8x32xf32, #tpu.memory_space<vmem>>, vector<8x32xf32>
    %c0_2 = arith.constant 0 : index
    %c0_3 = arith.constant 0 : index
    %6 = vector.load %arg3[%c0_2, %c0_3] : memref<8x32xf32, #tpu.memory_space<vmem>>, vector<8x32xf32>
    %c8_i32 = arith.constant 8 : i32
    %7 = arith.muli %1, %c8_i32 : i32
    %8 = tpu.assume_multiple %7, 8 : i32
    %9 = arith.index_cast %8 : i32 to index
    %c0_4 = arith.constant 0 : index
    %10 = vector.load %arg4[%9, %c0_4] : memref<8x1xf32, #tpu.memory_space<vmem>>, vector<8x1xf32>
    %11 = arith.subf %5, %6 : vector<8x32xf32>
    %12 = arith.mulf %11, %11 : vector<8x32xf32>
    %cst = arith.constant dense<0.000000e+00> : vector<8xf32>
    %13 = vector.multi_reduction <add>, %12, %cst [1] : vector<8x32xf32> to vector<8xf32>
    %14 = vector.shape_cast %13 : vector<8xf32> to vector<8x1xf32>
    %15 = math.sqrt %14 : vector<8x1xf32>
    %cst_5 = arith.constant 1.000000e+00 : f32
    %16 = vector.broadcast %cst_5 : f32 to vector<8x1xf32>
    %17 = arith.subf %16, %15 : vector<8x1xf32>
    %cst_6 = arith.constant 0.000000e+00 : f32
    %18 = vector.broadcast %cst_6 : f32 to vector<8x1xf32>
    %19 = arith.maximumf %17, %18 : vector<8x1xf32>
    %20 = arith.mulf %10, %14 : vector<8x1xf32>
    %cst_7 = arith.constant 1.000000e+00 : f32
    %21 = vector.broadcast %cst_7 : f32 to vector<8x1xf32>
    %22 = arith.subf %21, %10 : vector<8x1xf32>
    %23 = arith.mulf %22, %19 : vector<8x1xf32>
    %24 = arith.mulf %23, %19 : vector<8x1xf32>
    %25 = arith.addf %20, %24 : vector<8x1xf32>
    %c0_8 = arith.constant 0 : index
    %c0_9 = arith.constant 0 : index
    %c0_10 = arith.constant 0 : index
    %26 = vector.load %arg5[%c0_8, %c0_9, %c0_10] : memref<1x1x1xf32, #tpu.memory_space<vmem>>, vector<1x1x1xf32>
    %27 = vector.shape_cast %25 : vector<8x1xf32> to vector<1x8x1xf32>
    %cst_11 = arith.constant dense<0.000000e+00> : vector<1xf32>
    %28 = vector.multi_reduction <add>, %27, %cst_11 [1, 2] : vector<1x8x1xf32> to vector<1xf32>
    %29 = vector.shape_cast %28 : vector<1xf32> to vector<1x1x1xf32>
    %30 = vector.extract %29[0, 0, 0] : f32 from vector<1x1x1xf32>
    %31 = vector.broadcast %30 : f32 to vector<1x1x1xf32>
    %32 = arith.addf %26, %31 : vector<1x1x1xf32>
    %c0_12 = arith.constant 0 : index
    %c0_13 = arith.constant 0 : index
    %c0_14 = arith.constant 0 : index
    %33 = vector.load %arg5[%c0_12, %c0_13, %c0_14] : memref<1x1x1xf32, #tpu.memory_space<vmem>>, vector<1x1x1xf32>
    tpu.vector_store %arg5[%c0_12, %c0_13, %c0_14], %32 {strides = array<i32>} : memref<1x1x1xf32, #tpu.memory_space<vmem>>, vector<1x1x1xf32>,
    return
  }
  func.func @transform_0(%arg0: i32, %arg1: i32) -> (i32, i32) {
    %c1_i32 = arith.constant 1 : i32
    %0 = arith.muli %arg0, %c1_i32 : i32
    %1 = arith.addi %0, %arg1 : i32
    %c0_i32 = arith.constant 0 : i32
    %c0_i32_0 = arith.constant 0 : i32
    return %1, %c0_i32 : i32, i32
  }
  func.func @transform_1(%arg0: i32, %arg1: i32) -> (i32, i32) {
    %c1_i32 = arith.constant 1 : i32
    %0 = arith.muli %arg0, %c1_i32 : i32
    %1 = arith.addi %0, %arg1 : i32
    %c0_i32 = arith.constant 0 : i32
    %c0_i32_0 = arith.constant 0 : i32
    return %1, %c0_i32 : i32, i32
  }
  func.func @transform_2(%arg0: i32, %arg1: i32) -> (i32, i32) {
    %c0_i32 = arith.constant 0 : i32
    %c0_i32_0 = arith.constant 0 : i32
    %c0_i32_1 = arith.constant 0 : i32
    return %c0_i32, %c0_i32_0 : i32, i32
  }
  func.func @transform_3(%arg0: i32, %arg1: i32) -> (i32, i32, i32) {
    %c0_i32 = arith.constant 0 : i32
    %c0_i32_0 = arith.constant 0 : i32
    %c0_i32_1 = arith.constant 0 : i32
    return %arg0, %c0_i32, %c0_i32_0 : i32, i32, i32
  }
}

</mosaic_0001>

<llo_original>
// kernel: tpu_custom_call.1
$region0: #{tpu_custom_call.1}
  #allocation0 [shape = 'u32[]', space=smem, size = 0x4, offset = 0x4, fixed_abs, tag = 'smem constant byte address 0x4 - core index']
  #allocation1 [shape = 'u32[144,128]{1,0:T(1,128)}', space=vmem, size = 0x12000, scoped, tag = 'internal scratch']
  %s0 = inlined_call_operand.vmem [shape: f32[8,32], index: 0, kind: input, shape index: {}]
  %s1 = inlined_call_operand.hbm [shape: f32[8,32], index: 1, kind: input, shape index: {}]
  %s2 = inlined_call_operand.vmem [shape: f32[8,1], index: 2, kind: input, shape index: {}]
  %s3 = inlined_call_operand.hbm [shape: f32[1,1,1], index: 3, kind: output, shape index: {}]
  %s4 = sld [smem:[#allocation0]]
  $region30: #{tpu_custom_call.1} parent=0
    _
  %s6 = ssub.s32 1, %s4
  %s7 = scalar_select 0, %s6, %s4
  $region1: #{tpu_custom_call.1} parent=0
    #allocation2 [shape = 'u8[4096]{0}', space=vmem, size = 0x1000, scoped, tag = 'input window, operand 1, single buffered']
    #allocation3 [shape = 's32[1]{0}', space=sflag, size = 0x4, scoped, tag = 'scoped memory for tpu_custom_call.1']
    #allocation4 [shape = 's32[1]{0}', space=sflag, size = 0x4, scoped, tag = 'scoped memory for tpu_custom_call.1']
    #allocation5 [shape = 'u8[512]{0}', space=vmem, size = 0x400, scoped, tag = 'output window, operand 0, single buffered']
    %8 = vsyncpa [#allocation3], 0
    %9 = vsyncpa [#allocation4], 0
    // Predicated region
    $region2: #{tpu_custom_call.1} parent=1 // pred_check
      _
    $region3: #{tpu_custom_call.1} parent=1 // pred_check_branch
      %11 = sbr.rel (0) target = $region5
    $region4: #{tpu_custom_call.1} parent=1 // pred_region
      %s12 = sadd.s32 0, 0
      %p13 = scmp.lt.s32.totalorder %s12, 0
      %s14 = scalar_select %p13, %s12, 0
      %s15 = smul.addr %s14, 8
      %s16 = scalar_lea.vmem %s0, %s15
      %s17 = sadd.s32 0, 0
    $region5: #{tpu_custom_call.1} parent=1 // pred_fallthru
      _
    // Predicated region
    $region6: #{tpu_custom_call.1} parent=1 // pred_check
      _
    $region7: #{tpu_custom_call.1} parent=1 // pred_check_branch
      %19 = sbr.rel (0) target = $region9
    $region8: #{tpu_custom_call.1} parent=1 // pred_region
      %s20 = sadd.s32 0, 0
      %s22 = ssub.s32 128, 128
      %23 = vsyncadd [#allocation3], %s22
      %s24 = smul.addr %s20, 128
      %s25 = scalar_lea.hbm %s1, %s24
      %s27 = sshll.u32 [#allocation2], 4
      %s28 = int_to_ptr.vmem [resolvable:$true] %s27
      %30 = dma.hbm_to_vmem [thread:$0]  %s25, 128, %s28, [#allocation3]
    $region9: #{tpu_custom_call.1} parent=1 // pred_fallthru
      _
    // Predicated region
    $region10: #{tpu_custom_call.1} parent=1 // pred_check
      _
    $region11: #{tpu_custom_call.1} parent=1 // pred_check_branch
      %32 = sbr.rel (0) target = $region13
    $region12: #{tpu_custom_call.1} parent=1 // pred_region
      _
    $region13: #{tpu_custom_call.1} parent=1 // pred_fallthru
      _
    // Predicated region
    $region14: #{tpu_custom_call.1} parent=1 // pred_check
      _
    $region15: #{tpu_custom_call.1} parent=1 // pred_check_branch
      %34 = sbr.rel (0) target = $region17
    $region16: #{tpu_custom_call.1} parent=1 // pred_region
      %35 = dma.done [#allocation3], 128
    $region17: #{tpu_custom_call.1} parent=1 // pred_fallthru
      _
    %s36 = sadd.s32 0, 0
    %p37 = scmp.lt.s32.totalorder %s36, 0
    %s38 = scalar_select %p37, %s36, 0
    %s39 = smul.addr %s38, 8
    %s40 = scalar_lea.vmem %s0, %s39
    %s41 = sadd.s32 0, 0
    %p42 = scmp.lt.s32.totalorder %s41, 0
    %s43 = scalar_select %p42, %s41, 0
    %s44 = smul.addr %s43, 8
    %s45 = scalar_lea.vmem %s0, %s44
    %s46 = sadd.s32 0, 0
    %s47 = sadd.s32 0, 0
    %s48 = sadd.s32 0, 0
    %p49 = scmp.eq.s32.totalorder 0, 0
    // Predicated region
    $region18: #{tpu_custom_call.1} parent=1 // pred_check
      %p50 = pneg %p49
    $region19: #{tpu_custom_call.1} parent=1 // pred_check_branch
      %52 = sbr.rel (%p50) target = $region21
    $region20: #{tpu_custom_call.1} parent=1 // pred_region
      %vm53 = vcmask 0
      %54 = vst.msk [vmem:[#allocation5] sm:$0x1] %vm53, 0.0
    $region21: #{tpu_custom_call.1} parent=1 // pred_fallthru
      _
    %v55 = vld [vmem:[%s45] sm:$0xff]
    %v56 = vld [vmem:[#allocation2] sm:$0xff]
    %s57 = smul.u32 %s48, 8
    %s58 = scalar_lea.vmem %s2, %s57
    %v59 = vld [vmem:[%s58] sm:$0xff]
    %v60 = vsub.f32 %v55, %v56
    %v61 = vmul.f32 %v60, %v60
    %vm62 = vcmask 261120
    %v63 = vsel %vm62, %v61, 0.0
    %64 = vadd.xlane.f32.xlu0 %v63
    %v65 = vpop.xlane.xlu0 %64
    %v66 = vrsqrt.pop %v65
    %v67 = vmul.f32 %v65, %v66
    %vm68 = vcmp.eq.f32.partialorder %v65, inf
    %v69 = vsel %vm68, %v65, %v67
    %vm70 = vcmp.eq.f32.partialorder %v65, 0.0
    %v71 = vand.u32 %v65, 2147483648
    %v72 = vsel %vm70, %v71, %v69
    %v73 = vsub.f32 1.0, %v72
    %v74 = vmax.f32 %v73, 0.0
    %v75 = vmul.f32 %v59, %v65
    %v76 = vsub.f32 1.0, %v59
    %v77 = vmul.f32 %v76, %v74
    %v78 = vmul.f32 %v77, %v74
    %v79 = vadd.f32 %v75, %v78
    %v80 = vld [vmem:[#allocation5] sm:$0x1]
    %vm81 = vcmask 7168
    %v82 = vsel %vm81, %v79, 0.0
    %83 = vadd.xlane.f32.xlu0 %v82
    %v84 = vpop.xlane.xlu0 %83
    %v85 = vrot.slane %v84, 4
    %v86 = vadd.f32 %v84, %v85
    %v87 = vrot.slane %v86, 2
    %v88 = vadd.f32 %v86, %v87
    %v89 = vrot.slane %v88, 1
    %v90 = vadd.f32 %v88, %v89
    %s91 = vtos %v90
    %v92 = vstv %s91
    %v93 = vadd.f32 %v80, %v92
    %vm94 = vcmask 0
    %95 = vst.msk [vmem:[#allocation5] sm:$0x1] %vm94, %v93
    // Predicated region
    $region22: #{tpu_custom_call.1} parent=1 // pred_check
      _
    $region23: #{tpu_custom_call.1} parent=1 // pred_check_branch
      %97 = sbr.rel (0) target = $region25
    $region24: #{tpu_custom_call.1} parent=1 // pred_region
      %s99 = ssub.s32 16, 16
      %100 = vsyncadd [#allocation4], %s99
      %s102 = sshll.u32 [#allocation5], 4
      %s103 = int_to_ptr.vmem [resolvable:$true] %s102
      %105 = dma.vmem_to_hbm [thread:$0]  %s103, 16, %s3, [#allocation4]
    $region25: #{tpu_custom_call.1} parent=1 // pred_fallthru
      _
    // Predicated region
    $region26: #{tpu_custom_call.1} parent=1 // pred_check
      _
    $region27: #{tpu_custom_call.1} parent=1 // pred_check_branch
      %107 = sbr.rel (0) target = $region29
    $region28: #{tpu_custom_call.1} parent=1 // pred_region
      %108 = dma.done [#allocation4], 16
    $region29: #{tpu_custom_call.1} parent=1 // pred_fallthru
      _
    %109 = vsyncpa [#allocation3], 1
    %110 = vsyncpa [#allocation4], 1

</llo_original>
